<compile_context>
chip_gen: v6e
topology: v6e:2x2x1
jax: 0.10.0
libtpu: 0.0.40
codegen_flags: <defaults>
</compile_context>

<pallas_src>
import math

import jax
import jax.numpy as jnp
from jax.experimental import pallas as pl
from jax.experimental.pallas import tpu as pltpu


def claim_classifier_kernel(scal_ref, xt_ref, w1_ref, o_ref):
    # xt_ref : (F, TB)      -- features on sublanes, batch on lanes
    # w1_ref : (F, 1) f32   -- per-feature weight (resident, lane-replicated)
    # scal_ref: SMEM (3,) f32 = [b1, w2, b2]
    x = xt_ref[...].astype(jnp.float32)                           # cast hidden under DMA
    w1 = w1_ref[...]
    # Linear(F, 1): elementwise multiply (VPU) + cross-sublane reduce (XLU).
    h = jnp.sum(x * w1, axis=0, keepdims=True) + scal_ref[0]      # (1, TB)
    t = jnp.tanh(h)                                               # EUP
    # Linear(1, 1): scalar fused multiply-add from SMEM.
    z = t * scal_ref[1] + scal_ref[2]
    # sigmoid(z) == 0.5 * (tanh(0.5 * z) + 1)  -- EUP, no VPU divide.
    o_ref[...] = 0.5 * (jnp.tanh(0.5 * z) + 1.0)


def claim_classifier_forward(x, w1, b1, w2, b2, *, max_tile=65536):
    """x: (B, F); w1: (F, 1); b1/w2/b2: (1, 1) (or scalar) -> (B, 1) f32."""
    B, F = x.shape

    # Lane-aligned batch tile: as big as possible (amortize ~0.35us/step grid
    # overhead) but never more than half the (rounded) batch so the grid has
    # >= 2 parallel steps when B allows it (keeps both v7x TensorCores busy).
    half = pl.cdiv(pl.cdiv(B, 2), 128) * 128
    TB = max(128, min(max_tile, half))
    grid = pl.cdiv(B, TB)

    # Lane-dense feed: batch on the lane axis. Single fused XLA transpose, no
    # explicit zero-pad (Pallas pads the ragged last block; lanes are
    # independent and padded lanes are never read back).
    # TODO(synk): have the upstream producer emit x already in (F, B) layout so
    # even this transpose pass over HBM disappears.
    xt = x.T                                    # keep native dtype; cast in-kernel
    w1c = jnp.asarray(w1, jnp.float32).reshape(F, 1)
    scal = jnp.concatenate([
        jnp.reshape(b1, (1,)), jnp.reshape(w2, (1,)), jnp.reshape(b2, (1,))
    ]).astype(jnp.float32)

    out = pl.pallas_call(
        claim_classifier_kernel,
        out_shape=jax.ShapeDtypeStruct((1, B), jnp.float32),
        grid=(grid,),
        in_specs=[
            pl.BlockSpec(memory_space=pltpu.MemorySpace.SMEM),   # [b1, w2, b2]
            pl.BlockSpec((F, TB), lambda i: (0, i)),             # x^T tile
            pl.BlockSpec((F, 1), lambda i: (0, 0)),              # w1 (resident)
        ],
        out_specs=pl.BlockSpec((1, TB), lambda i: (0, i)),
        compiler_params=pltpu.CompilerParams(
            dimension_semantics=("parallel",),
            vmem_limit_bytes=32 * 1024 * 1024),
        cost_estimate=pl.CostEstimate(
            flops=2 * B * F + 4 * B,
            transcendentals=2 * B,
            bytes_accessed=xt.size * xt.dtype.itemsize + 4 * B + 4 * (F + 3)),
    )(scal, xt, w1c)

    # Restore the PyTorch (B, 1) output shape.
    return out.reshape(B, 1)


def init_params(key, num_features):
    """Deterministic init mimicking torch.nn.Linear (U[-1/sqrt(fan_in), 1/sqrt(fan_in)])."""
    k1, k2, k3, k4 = jax.random.split(key, 4)
    bound1 = 1.0 / math.sqrt(num_features)
    w1 = jax.random.uniform(k1, (num_features, 1), jnp.float32, -bound1, bound1)
    b1 = jax.random.uniform(k2, (1, 1), jnp.float32, -bound1, bound1)
    bound2 = 1.0  # fan_in = 1 for Linear(1, 1)
    w2 = jax.random.uniform(k3, (1, 1), jnp.float32, -bound2, bound2)
    b2 = jax.random.uniform(k4, (1, 1), jnp.float32, -bound2, bound2)
    return w1, b1, w2, b2


def reference_forward(x, w1, b1, w2, b2):
    h = jnp.tanh(x @ w1 + b1)
    return jax.nn.sigmoid(h @ w2 + b2)


if __name__ == "__main__":
    key = jax.random.PRNGKey(0)
    k_x, k_p = jax.random.split(key)

    batch = 8
    num_features = 9  # insurance claim dataset: 9 preprocessed feature columns

    # Inputs are min-max normalised to [0, 1] by the module's _preprocessor.
    x = jax.random.uniform(k_x, (batch, num_features), jnp.float32)
    w1, b1, w2, b2 = init_params(k_p, num_features)

    out = claim_classifier_forward(x, w1, b1, w2, b2)
    out = jax.block_until_ready(out)

    ref = reference_forward(x, w1, b1, w2, b2)
    assert out.shape == (batch, 1)
    assert jnp.allclose(out, ref, atol=1e-5, rtol=1e-5), (out, ref)

    print("KERNEL_OK")
</pallas_src>

<mosaic_0001>
module attributes {stable_mosaic.version = 11 : i64} {
  func.func @claim_classifier_kernel(%arg0: i32, %arg1: memref<3xf32, #tpu.memory_space<smem>>, %arg2: memref<9x128xf32, #tpu.memory_space<vmem>>, %arg3: memref<9x1xf32, #tpu.memory_space<vmem>>, %arg4: memref<1x128xf32, #tpu.memory_space<vmem>>) attributes {dimension_semantics = [#tpu.dimension_semantics<parallel>], iteration_bounds = array<i64: 1>, scalar_prefetch = 0 : i64, scratch_operands = 0 : i64, tpu.core_type = #tpu.core_type<tc>, window_params = [{transform_indices = @transform_0, window_bounds = array<i64: 3>}, {transform_indices = @transform_1, window_bounds = array<i64: 9, 128>}, {pipeline_mode = #tpu.pipeline_mode<synchronous>, transform_indices = @transform_2, window_bounds = array<i64: 9, 1>}, {transform_indices = @transform_3, window_bounds = array<i64: 1, 128>}]} {
    %c0 = arith.constant 0 : index
    %c0_0 = arith.constant 0 : index
    %0 = vector.load %arg2[%c0, %c0_0] : memref<9x128xf32, #tpu.memory_space<vmem>>, vector<9x128xf32>
    %c0_1 = arith.constant 0 : index
    %c0_2 = arith.constant 0 : index
    %1 = vector.load %arg3[%c0_1, %c0_2] : memref<9x1xf32, #tpu.memory_space<vmem>>, vector<9x1xf32>
    %2 = vector.broadcast %1 : vector<9x1xf32> to vector<9x128xf32>
    %3 = arith.mulf %0, %2 : vector<9x128xf32>
    %cst = arith.constant dense<0.000000e+00> : vector<128xf32>
    %4 = vector.multi_reduction <add>, %3, %cst [0] : vector<9x128xf32> to vector<128xf32>
    %5 = vector.shape_cast %4 : vector<128xf32> to vector<1x128xf32>
    %c0_3 = arith.constant 0 : index
    %6 = memref.load %arg1[%c0_3] : memref<3xf32, #tpu.memory_space<smem>>
    %7 = vector.broadcast %6 : f32 to vector<1x128xf32>
    %8 = arith.addf %5, %7 : vector<1x128xf32>
    %9 = math.tanh %8 : vector<1x128xf32>
    %c1 = arith.constant 1 : index
    %10 = memref.load %arg1[%c1] : memref<3xf32, #tpu.memory_space<smem>>
    %11 = vector.broadcast %10 : f32 to vector<1x128xf32>
    %12 = arith.mulf %9, %11 : vector<1x128xf32>
    %c2 = arith.constant 2 : index
    %13 = memref.load %arg1[%c2] : memref<3xf32, #tpu.memory_space<smem>>
    %14 = vector.broadcast %13 : f32 to vector<1x128xf32>
    %15 = arith.addf %12, %14 : vector<1x128xf32>
    %cst_4 = arith.constant 5.000000e-01 : f32
    %16 = vector.broadcast %cst_4 : f32 to vector<1x128xf32>
    %17 = arith.mulf %16, %15 : vector<1x128xf32>
    %18 = math.tanh %17 : vector<1x128xf32>
    %cst_5 = arith.constant 1.000000e+00 : f32
    %19 = vector.broadcast %cst_5 : f32 to vector<1x128xf32>
    %20 = arith.addf %18, %19 : vector<1x128xf32>
    %cst_6 = arith.constant 5.000000e-01 : f32
    %21 = vector.broadcast %cst_6 : f32 to vector<1x128xf32>
    %22 = arith.mulf %21, %20 : vector<1x128xf32>
    %c0_7 = arith.constant 0 : index
    %c0_8 = arith.constant 0 : index
    %23 = vector.load %arg4[%c0_7, %c0_8] : memref<1x128xf32, #tpu.memory_space<vmem>>, vector<1x128xf32>
    tpu.vector_store %arg4[%c0_7, %c0_8], %22 {strides = array<i32>} : memref<1x128xf32, #tpu.memory_space<vmem>>, vector<1x128xf32>,
    return
  }
  func.func @transform_0(%arg0: i32) -> i32 {
    %c0_i32 = arith.constant 0 : i32
    %c0_i32_0 = arith.constant 0 : i32
    return %c0_i32 : i32
  }
  func.func @transform_1(%arg0: i32) -> (i32, i32) {
    %c0_i32 = arith.constant 0 : i32
    %c0_i32_0 = arith.constant 0 : i32
    return %c0_i32, %arg0 : i32, i32
  }
  func.func @transform_2(%arg0: i32) -> (i32, i32) {
    %c0_i32 = arith.constant 0 : i32
    %c0_i32_0 = arith.constant 0 : i32
    %c0_i32_1 = arith.constant 0 : i32
    return %c0_i32, %c0_i32_0 : i32, i32
  }
  func.func @transform_3(%arg0: i32) -> (i32, i32) {
    %c0_i32 = arith.constant 0 : i32
    %c0_i32_0 = arith.constant 0 : i32
    return %c0_i32, %arg0 : i32, i32
  }
}

</mosaic_0001>

<llo_original>
// kernel: tpu_custom_call.1
$region0: #{tpu_custom_call.1}
  #allocation0 [shape = 'u32[]', space=smem, size = 0x4, offset = 0x4, fixed_abs, tag = 'smem constant byte address 0x4 - core index']
  #allocation1 [shape = 'u32[144,128]{1,0:T(1,128)}', space=vmem, size = 0x12000, scoped, tag = 'internal scratch']
  %s0 = inlined_call_operand.vmem [shape: f32[3], index: 0, kind: input, shape index: {}]
  %s1 = inlined_call_operand.vmem [shape: f32[9,8], index: 1, kind: input, shape index: {}]
  %s2 = inlined_call_operand.vmem [shape: f32[9,1], index: 2, kind: input, shape index: {}]
  %s3 = inlined_call_operand.hbm [shape: f32[1,8], index: 3, kind: output, shape index: {}]
  %s4 = sld [smem:[#allocation0]]
  $region26: #{tpu_custom_call.1} parent=0
    _
  %s6 = ssub.s32 1, %s4
  %s7 = scalar_select 0, %s6, %s4
  $region1: #{tpu_custom_call.1} parent=0
    #allocation2 [shape = 'u8[512]{0}', space=smem, size = 0x200, scoped, tag = 'input window, operand 0, single buffered']
    #allocation3 [shape = 's32[1]{0}', space=sflag, size = 0x4, scoped, tag = 'scoped memory for tpu_custom_call.1']
    #allocation4 [shape = 's32[1]{0}', space=sflag, size = 0x4, scoped, tag = 'scoped memory for tpu_custom_call.1']
    #allocation5 [shape = 'u8[512]{0}', space=vmem, size = 0x400, scoped, tag = 'output window, operand 0, single buffered']
    %8 = vsyncpa [#allocation4], 0
    %9 = vsyncpa [#allocation3], 0
    // Predicated region
    $region2: #{tpu_custom_call.1} parent=1 // pred_check
      _
    $region3: #{tpu_custom_call.1} parent=1 // pred_check_branch
      %11 = sbr.rel (0) target = $region5
    $region4: #{tpu_custom_call.1} parent=1 // pred_region
      %s13 = ssub.s32 16, 16
      %14 = vsyncadd [#allocation4], %s13
      %s16 = sshll.u32 %s0, 4
      %s17 = int_to_ptr.vmem [resolvable:$true] %s16
      %19 = dma.vmem_to_smem %s17, 16, [#allocation2], [#allocation4]
    $region5: #{tpu_custom_call.1} parent=1 // pred_fallthru
      _
    // Predicated region
    $region6: #{tpu_custom_call.1} parent=1 // pred_check
      _
    $region7: #{tpu_custom_call.1} parent=1 // pred_check_branch
      %21 = sbr.rel (0) target = $region9
    $region8: #{tpu_custom_call.1} parent=1 // pred_region
      _
    $region9: #{tpu_custom_call.1} parent=1 // pred_fallthru
      _
    // Predicated region
    $region10: #{tpu_custom_call.1} parent=1 // pred_check
      _
    $region11: #{tpu_custom_call.1} parent=1 // pred_check_branch
      %23 = sbr.rel (0) target = $region13
    $region12: #{tpu_custom_call.1} parent=1 // pred_region
      _
    $region13: #{tpu_custom_call.1} parent=1 // pred_fallthru
      _
    // Predicated region
    $region14: #{tpu_custom_call.1} parent=1 // pred_check
      _
    $region15: #{tpu_custom_call.1} parent=1 // pred_check_branch
      %25 = sbr.rel (0) target = $region17
    $region16: #{tpu_custom_call.1} parent=1 // pred_region
      %26 = dma.done [#allocation4], 16
    $region17: #{tpu_custom_call.1} parent=1 // pred_fallthru
      _
    %27 = sfence
    %v28 = vld [vmem:[%s1] sm:$0xff]
    %v29 = vld [vmem:[%s1 + $0x8] sm:$0x1]
    %v30 = vld [vmem:[%s2] sm:$0xff]
    %v31 = vld [vmem:[%s2 + $0x8] sm:$0x1]
    %33 = vset.pattern.permute.xlu0 0
    %34 = vperm.xlu0 %33, %v30
    %v35 = vpop.permute.xlu0 %34
    %38 = vset.pattern.permute.xlu0 0
    %39 = vperm.xlu0 %38, %v31
    %v40 = vpop.permute.xlu0 %39
    %v42 = vmul.f32 %v28, %v35
    %v43 = vmul.f32 %v29, %v40
    %vm44 = vcmask 1040384
    %v45 = vsel %vm44, %v43, 0.0
    %v46 = vadd.f32 %v42, %v45
    %v47 = vrot.slane %v46, 4
    %v48 = vadd.f32 %v46, %v47
    %v49 = vrot.slane %v48, 2
    %v50 = vadd.f32 %v48, %v49
    %v51 = vrot.slane %v50, 1
    %v52 = vadd.f32 %v50, %v51
    %s53 = sld [smem:[#allocation2]]
    %v54 = vstv %s53
    %v55 = vadd.f32 %v52, %v54
    %v56 = vtanh.pop %v55
    %s57 = sld [smem:[#allocation2 + $0x1]]
    %v58 = vstv %s57
    %v59 = vmul.f32 %v56, %v58
    %s60 = sld [smem:[#allocation2 + $0x2]]
    %v61 = vstv %s60
    %v62 = vadd.f32 %v59, %v61
    %v63 = vmul.f32 %v62, 0.5
    %v64 = vtanh.pop %v63
    %v65 = vadd.f32 %v64, 1.0
    %v66 = vmul.f32 %v65, 0.5
    %67 = vst [vmem:[#allocation5] sm:$0x1] %v66
    // Predicated region
    $region18: #{tpu_custom_call.1} parent=1 // pred_check
      _
    $region19: #{tpu_custom_call.1} parent=1 // pred_check_branch
      %69 = sbr.rel (0) target = $region21
    $region20: #{tpu_custom_call.1} parent=1 // pred_region
      %s71 = ssub.s32 16, 16
      %72 = vsyncadd [#allocation3], %s71
      %s74 = sshll.u32 [#allocation5], 4
      %s75 = int_to_ptr.vmem [resolvable:$true] %s74
      %77 = dma.vmem_to_hbm [thread:$0]  %s75, 16, %s3, [#allocation3]
    $region21: #{tpu_custom_call.1} parent=1 // pred_fallthru
      _
    // Predicated region
    $region22: #{tpu_custom_call.1} parent=1 // pred_check
      _
    $region23: #{tpu_custom_call.1} parent=1 // pred_check_branch
      %79 = sbr.rel (0) target = $region25
    $region24: #{tpu_custom_call.1} parent=1 // pred_region
      %80 = dma.done [#allocation3], 16
    $region25: #{tpu_custom_call.1} parent=1 // pred_fallthru
      _
    %81 = vsyncpa [#allocation3], 1
    %82 = vsyncpa [#allocation4], 1

</llo_original>
